<compile_context>
chip_gen: v6e
topology: v6e:2x2x1
jax: 0.10.0
libtpu: 0.0.40
codegen_flags: <defaults>
</compile_context>

<pallas_src>
import jax
import jax.numpy as jnp
from jax.experimental import pallas as pl
from jax.experimental.pallas import tpu as pltpu


def _layernorm(x, g, b, eps=1e-5):
    mu = jnp.mean(x, axis=-1, keepdims=True)
    xc = x - mu
    var = jnp.mean(xc * xc, axis=-1, keepdims=True)
    return xc * jax.lax.rsqrt(var + eps) * g + b


def _gelu(x):
    # exact (erf) GELU, matching nn.GELU(approximate='none')
    return 0.5 * x * (1.0 + jax.lax.erf(x * jnp.float32(0.7071067811865476)))


# ---------------------------------------------------------------------------
# Kernel 1: LayerNorm1 + QKV projection -> head-major (3H, tn, D) bf16 output.
# ---------------------------------------------------------------------------
def qkv_kernel(x_ref, ln1g_ref, ln1b_ref, wqkv_ref, qkv_ref):
    x = x_ref[...].astype(jnp.float32)                  # (tn, C)
    h = _layernorm(x, ln1g_ref[...], ln1b_ref[...])     # f32 LN math
    qkv = jnp.dot(h.astype(wqkv_ref.dtype), wqkv_ref[...],
                  preferred_element_type=jnp.float32)   # (tn, 3C); q pre-scaled via W_qkv
    three_h, tn, d = qkv_ref.shape
    qkv = qkv.reshape(tn, three_h, d)
    # one-time layout plumbing: present qkv head-major for batched attention
    qkv_ref[...] = jnp.transpose(qkv, (1, 0, 2)).astype(qkv_ref.dtype)


# ---------------------------------------------------------------------------
# Kernel 2: flash attention (online softmax over k-tiles) + proj + residual
#           + LayerNorm2 + MLP + residual.
# ---------------------------------------------------------------------------
def attn_mlp_kernel(q_ref, k_ref, v_ref, x_ref, ln2g_ref, ln2b_ref,
                    wproj_ref, bproj_ref, wfc1_ref, bfc1_ref,
                    wfc2_ref, bfc2_ref, o_ref,
                    m_sc, l_sc, acc_sc):
    ki = pl.program_id(2)

    @pl.when(ki == 0)
    def _():
        m_sc[...] = jnp.full_like(m_sc, -jnp.inf)
        l_sc[...] = jnp.zeros_like(l_sc)
        acc_sc[...] = jnp.zeros_like(acc_sc)

    q = q_ref[...]                                      # (H, tq, D) bf16 (pre-scaled)
    k = k_ref[...]                                      # (H, tk, D) bf16
    v = v_ref[...]                                      # (H, tk, D) bf16

    # batched over heads: one MXU contraction per head tile, no per-head Python loop
    s = jnp.einsum("hqd,hkd->hqk", q, k,
                   preferred_element_type=jnp.float32)  # (H, tq, tk) f32
    m_new = jnp.maximum(m_sc[...], jnp.max(s, axis=-1, keepdims=True))
    alpha = jnp.exp(m_sc[...] - m_new)
    p = jnp.exp(s - m_new)
    l_sc[...] = alpha * l_sc[...] + jnp.sum(p, axis=-1, keepdims=True)
    acc_sc[...] = alpha * acc_sc[...] + jnp.einsum(
        "hqk,hkd->hqd", p.astype(v.dtype), v, preferred_element_type=jnp.float32)
    m_sc[...] = m_new

    @pl.when(ki == pl.num_programs(2) - 1)
    def _():
        h_heads, tq, d = acc_sc.shape
        c = h_heads * d
        # softmax normalization via EUP approx reciprocal (free next to MXU pushes)
        ctx = acc_sc[...] * pl.reciprocal(l_sc[...], approx=True)   # (H, tq, D) f32
        ctx = jnp.transpose(ctx, (1, 0, 2)).reshape(tq, c)          # (tq, C)

        xres = x_ref[...].astype(jnp.float32)                       # (tq, C)
        attn_out = jnp.dot(ctx.astype(wproj_ref.dtype), wproj_ref[...],
                           preferred_element_type=jnp.float32) + bproj_ref[...]
        x1 = xres + attn_out

        h2 = _layernorm(x1, ln2g_ref[...], ln2b_ref[...])
        h2 = jnp.dot(h2.astype(wfc1_ref.dtype), wfc1_ref[...],
                     preferred_element_type=jnp.float32) + bfc1_ref[...]
        h2 = _gelu(h2)
        h2 = jnp.dot(h2.astype(wfc2_ref.dtype), wfc2_ref[...],
                     preferred_element_type=jnp.float32) + bfc2_ref[...]
        h2 = _gelu(h2)   # reference MLP applies GELU after fc2 as well
        o_ref[...] = (x1 + h2).astype(o_ref.dtype)


# ---------------------------------------------------------------------------
# Wrapper
# ---------------------------------------------------------------------------
def _pick_tile(n, target):
    # largest tile <= target that divides n and satisfies the (8,128) sublane rule
    for t in range(min(target, n), 0, -1):
        if n % t == 0 and (t % 8 == 0 or t == n):
            return t
    return n


def block_forward(x, params, num_heads, *, seq_tile=256):
    B, N, C = x.shape
    assert C % num_heads == 0
    H = num_heads
    D = C // H
    scale = float(D) ** -0.5
    f32, bf16 = jnp.float32, jnp.bfloat16

    # Weight plumbing in the wrapper: fold the query scale into the q columns of W_qkv
    # (qkv_bias=False so this is exact), and cast matmul weights to bf16 (MXU-native).
    col_scale = jnp.concatenate(
        [jnp.full((C,), scale, f32), jnp.ones((2 * C,), f32)])[None, :]
    w_qkv = (params["w_qkv"].astype(f32) * col_scale).astype(bf16)
    w_proj = params["w_proj"].astype(bf16)
    w_fc1 = params["w_fc1"].astype(bf16)
    w_fc2 = params["w_fc2"].astype(bf16)

    tn = _pick_tile(N, seq_tile)   # qkv-projection row tile
    tq = _pick_tile(N, seq_tile)   # attention query tile
    tk = _pick_tile(N, seq_tile)   # attention key tile

    const_vmem = pl.BlockSpec(memory_space=pltpu.MemorySpace.VMEM)  # untiled, single copy
    cparams2 = pltpu.CompilerParams(
        dimension_semantics=("parallel", "parallel"),
        vmem_limit_bytes=64 * 1024 * 1024)
    cparams3 = pltpu.CompilerParams(
        dimension_semantics=("parallel", "parallel", "arbitrary"),
        vmem_limit_bytes=64 * 1024 * 1024)

    # ---- Kernel 1: LN1 + QKV projection (head-major bf16 output) ----
    qkv_hm = pl.pallas_call(
        qkv_kernel,
        out_shape=jax.ShapeDtypeStruct((B, 3 * H, N, D), bf16),
        grid=(B, N // tn),
        in_specs=[
            pl.BlockSpec((None, tn, C), lambda b, s: (b, s, 0)),   # x tile
            const_vmem, const_vmem,                                # ln1 gamma/beta (1,C)
            const_vmem,                                            # W_qkv (C,3C) bf16
        ],
        out_specs=pl.BlockSpec((None, 3 * H, tn, D), lambda b, s: (b, 0, s, 0)),
        compiler_params=cparams2,
    )(x, params["ln1_g"], params["ln1_b"], w_qkv)

    # ---- Kernel 2: flash attention + proj + residual + LN2 + MLP + residual ----
    out = pl.pallas_call(
        attn_mlp_kernel,
        out_shape=jax.ShapeDtypeStruct((B, N, C), x.dtype),
        grid=(B, N // tq, N // tk),
        in_specs=[
            pl.BlockSpec((None, H, tq, D), lambda b, qi, ki: (b, 0, qi, 0)),  # Q heads
            pl.BlockSpec((None, H, tk, D), lambda b, qi, ki: (b, 1, ki, 0)),  # K heads
            pl.BlockSpec((None, H, tk, D), lambda b, qi, ki: (b, 2, ki, 0)),  # V heads
            pl.BlockSpec((None, tq, C), lambda b, qi, ki: (b, qi, 0)),        # residual x
            const_vmem, const_vmem,                     # ln2 gamma/beta (1,C)
            const_vmem, const_vmem,                     # W_proj bf16, b_proj (1,C)
            const_vmem, const_vmem,                     # W_fc1 bf16, b_fc1 (1,hidden)
            const_vmem, const_vmem,                     # W_fc2 bf16, b_fc2 (1,C)
        ],
        out_specs=pl.BlockSpec((None, tq, C), lambda b, qi, ki: (b, qi, 0)),
        scratch_shapes=[
            pltpu.VMEM((H, tq, 1), jnp.float32),   # m: running row max
            pltpu.VMEM((H, tq, 1), jnp.float32),   # l: running softmax denom
            pltpu.VMEM((H, tq, D), jnp.float32),   # acc: unnormalized context
        ],
        compiler_params=cparams3,
    )(qkv_hm, qkv_hm, qkv_hm, x,
      params["ln2_g"], params["ln2_b"],
      w_proj, params["b_proj"],
      w_fc1, params["b_fc1"],
      w_fc2, params["b_fc2"])
    return out


# ---------------------------------------------------------------------------
# Pure-JAX reference (mirrors the PyTorch Block forward, dropouts are p=0)
# ---------------------------------------------------------------------------
def block_reference(x, params, num_heads):
    B, N, C = x.shape
    H = num_heads
    D = C // H
    scale = float(D) ** -0.5

    def ln(v, g, b, eps=1e-5):
        mu = jnp.mean(v, axis=-1, keepdims=True)
        var = jnp.mean((v - mu) ** 2, axis=-1, keepdims=True)
        return (v - mu) * jax.lax.rsqrt(var + eps) * g + b

    h = ln(x, params["ln1_g"], params["ln1_b"])
    qkv = h @ params["w_qkv"]
    qkv = qkv.reshape(B, N, 3, H, D).transpose(2, 0, 3, 1, 4)
    q, k, v = qkv[0], qkv[1], qkv[2]
    attn = (q * scale) @ jnp.swapaxes(k, -1, -2)
    attn = jax.nn.softmax(attn, axis=-1)
    ctx = (attn @ v).transpose(0, 2, 1, 3).reshape(B, N, C)
    x = x + ctx @ params["w_proj"] + params["b_proj"]

    h2 = ln(x, params["ln2_g"], params["ln2_b"])
    h2 = h2 @ params["w_fc1"] + params["b_fc1"]
    h2 = jax.nn.gelu(h2, approximate=False)
    h2 = h2 @ params["w_fc2"] + params["b_fc2"]
    h2 = jax.nn.gelu(h2, approximate=False)
    return x + h2


if __name__ == "__main__":
    # Small shapes consistent with the module: B=2, N=8 (seq), C=32 (dim),
    # num_heads=4 (head_dim=8), mlp_ratio=4.0 -> hidden=128.
    B, N, C = 2, 8, 32
    num_heads = 4
    hidden = int(C * 4.0)

    key = jax.random.PRNGKey(0)
    k_qkv, k_proj, k_fc1w, k_fc1b, k_fc2w, k_fc2b, k_x = jax.random.split(key, 7)

    def init(k, shape, s=0.02):
        return (s * jax.random.normal(k, shape)).astype(jnp.float32)

    params = dict(
        ln1_g=jnp.ones((1, C), jnp.float32),
        ln1_b=jnp.zeros((1, C), jnp.float32),
        w_qkv=init(k_qkv, (C, 3 * C)),          # qkv_bias=False -> no bias
        w_proj=init(k_proj, (C, C)),
        b_proj=jnp.zeros((1, C), jnp.float32),
        ln2_g=jnp.ones((1, C), jnp.float32),
        ln2_b=jnp.zeros((1, C), jnp.float32),
        w_fc1=init(k_fc1w, (C, hidden)),
        b_fc1=init(k_fc1b, (1, hidden)),
        w_fc2=init(k_fc2w, (hidden, C)),
        b_fc2=init(k_fc2b, (1, C)),
    )

    x = jax.random.normal(k_x, (B, N, C), jnp.float32)

    out = block_forward(x, params, num_heads)
    jax.block_until_ready(out)

    ref = block_reference(x, params, num_heads)
    err = float(jnp.max(jnp.abs(out - ref)))

    assert out.shape == (B, N, C) and out.dtype == jnp.float32
    assert bool(jnp.all(jnp.isfinite(out)))
    assert err < 5e-2, f"max abs error vs reference: {err}"
    print("KERNEL_OK")
</pallas_src>

<mosaic_0001>
module attributes {stable_mosaic.version = 11 : i64} {
  func.func @qkv_kernel(%arg0: i32, %arg1: i32, %arg2: memref<1x8x32xf32, #tpu.memory_space<vmem>>, %arg3: memref<1x32xf32, #tpu.memory_space<vmem>>, %arg4: memref<1x32xf32, #tpu.memory_space<vmem>>, %arg5: memref<32x96xbf16, #tpu.memory_space<vmem>>, %arg6: memref<1x12x8x8xbf16, #tpu.memory_space<vmem>>) attributes {dimension_semantics = [#tpu.dimension_semantics<parallel>, #tpu.dimension_semantics<parallel>], iteration_bounds = array<i64: 2, 1>, scalar_prefetch = 0 : i64, scratch_operands = 0 : i64, tpu.core_type = #tpu.core_type<tc>, window_params = [{transform_indices = @transform_0, window_bounds = array<i64: 1, 8, 32>}, {pipeline_mode = #tpu.pipeline_mode<synchronous>, transform_indices = @transform_1, window_bounds = array<i64: 1, 32>}, {pipeline_mode = #tpu.pipeline_mode<synchronous>, transform_indices = @transform_2, window_bounds = array<i64: 1, 32>}, {pipeline_mode = #tpu.pipeline_mode<synchronous>, transform_indices = @transform_3, window_bounds = array<i64: 32, 96>}, {transform_indices = @transform_4, window_bounds = array<i64: 1, 12, 8, 8>}]} {
    %c0 = arith.constant 0 : index
    %c0_0 = arith.constant 0 : index
    %c0_1 = arith.constant 0 : index
    %0 = vector.load %arg2[%c0, %c0_0, %c0_1] : memref<1x8x32xf32, #tpu.memory_space<vmem>>, vector<1x8x32xf32>
    %1 = vector.shape_cast %0 : vector<1x8x32xf32> to vector<8x32xf32>
    %c0_2 = arith.constant 0 : index
    %c0_3 = arith.constant 0 : index
    %2 = vector.load %arg3[%c0_2, %c0_3] : memref<1x32xf32, #tpu.memory_space<vmem>>, vector<1x32xf32>
    %c0_4 = arith.constant 0 : index
    %c0_5 = arith.constant 0 : index
    %3 = vector.load %arg4[%c0_4, %c0_5] : memref<1x32xf32, #tpu.memory_space<vmem>>, vector<1x32xf32>
    %cst = arith.constant dense<0.000000e+00> : vector<8xf32>
    %4 = vector.multi_reduction <add>, %1, %cst [1] : vector<8x32xf32> to vector<8xf32>
    %5 = vector.shape_cast %4 : vector<8xf32> to vector<8x1xf32>
    %cst_6 = arith.constant 3.200000e+01 : f32
    %6 = vector.broadcast %cst_6 : f32 to vector<8x1xf32>
    %7 = arith.divf %5, %6 : vector<8x1xf32>
    %8 = vector.broadcast %7 : vector<8x1xf32> to vector<8x32xf32>
    %9 = arith.subf %1, %8 : vector<8x32xf32>
    %10 = arith.mulf %9, %9 : vector<8x32xf32>
    %cst_7 = arith.constant dense<0.000000e+00> : vector<8xf32>
    %11 = vector.multi_reduction <add>, %10, %cst_7 [1] : vector<8x32xf32> to vector<8xf32>
    %12 = vector.shape_cast %11 : vector<8xf32> to vector<8x1xf32>
    %cst_8 = arith.constant 3.200000e+01 : f32
    %13 = vector.broadcast %cst_8 : f32 to vector<8x1xf32>
    %14 = arith.divf %12, %13 : vector<8x1xf32>
    %cst_9 = arith.constant 9.99999974E-6 : f32
    %15 = vector.broadcast %cst_9 : f32 to vector<8x1xf32>
    %16 = arith.addf %14, %15 : vector<8x1xf32>
    %17 = math.rsqrt %16 : vector<8x1xf32>
    %18 = vector.broadcast %17 : vector<8x1xf32> to vector<8x32xf32>
    %19 = arith.mulf %9, %18 : vector<8x32xf32>
    %20 = vector.broadcast %2 : vector<1x32xf32> to vector<8x32xf32>
    %21 = arith.mulf %19, %20 : vector<8x32xf32>
    %22 = vector.broadcast %3 : vector<1x32xf32> to vector<8x32xf32>
    %23 = arith.addf %21, %22 : vector<8x32xf32>
    %24 = arith.truncf %23 : vector<8x32xf32> to vector<8x32xbf16>
    %c0_10 = arith.constant 0 : index
    %c0_11 = arith.constant 0 : index
    %25 = vector.load %arg5[%c0_10, %c0_11] : memref<32x96xbf16, #tpu.memory_space<vmem>>, vector<32x96xbf16>
    %cst_12 = arith.constant dense<0.000000e+00> : vector<8x96xf32>
    %26 = tpu.matmul %24, %25, %cst_12 {dimension_numbers = #tpu.dot_dimension_numbers<[1], [0], [0], [1], [0, 0, 1, 1], [], []>} : vector<8x32xbf16>, vector<32x96xbf16>, vector<8x96xf32> -> vector<8x96xf32>
    %27 = vector.shape_cast %26 : vector<8x96xf32> to vector<8x12x8xf32>
    %28 = tpu.transpose %27, [1, 0, 2] : vector<8x12x8xf32> -> vector<12x8x8xf32>
    %29 = arith.truncf %28 : vector<12x8x8xf32> to vector<12x8x8xbf16>
    %c0_13 = arith.constant 0 : index
    %c0_14 = arith.constant 0 : index
    %c0_15 = arith.constant 0 : index
    %c0_16 = arith.constant 0 : index
    %30 = vector.load %arg6[%c0_13, %c0_14, %c0_15, %c0_16] : memref<1x12x8x8xbf16, #tpu.memory_space<vmem>>, vector<1x12x8x8xbf16>
    %31 = vector.shape_cast %30 : vector<1x12x8x8xbf16> to vector<12x8x8xbf16>
    %32 = vector.shape_cast %29 : vector<12x8x8xbf16> to vector<1x12x8x8xbf16>
    tpu.vector_store %arg6[%c0_13, %c0_14, %c0_15, %c0_16], %32 {strides = array<i32>} : memref<1x12x8x8xbf16, #tpu.memory_space<vmem>>, vector<1x12x8x8xbf16>,
    return
  }
  func.func @transform_0(%arg0: i32, %arg1: i32) -> (i32, i32, i32) {
    %c0_i32 = arith.constant 0 : i32
    %c0_i32_0 = arith.constant 0 : i32
    return %arg0, %arg1, %c0_i32 : i32, i32, i32
  }
  func.func @transform_1(%arg0: i32, %arg1: i32) -> (i32, i32) {
    %c0_i32 = arith.constant 0 : i32
    %c0_i32_0 = arith.constant 0 : i32
    %c0_i32_1 = arith.constant 0 : i32
    return %c0_i32, %c0_i32_0 : i32, i32
  }
  func.func @transform_2(%arg0: i32, %arg1: i32) -> (i32, i32) {
    %c0_i32 = arith.constant 0 : i32
    %c0_i32_0 = arith.constant 0 : i32
    %c0_i32_1 = arith.constant 0 : i32
    return %c0_i32, %c0_i32_0 : i32, i32
  }
  func.func @transform_3(%arg0: i32, %arg1: i32) -> (i32, i32) {
    %c0_i32 = arith.constant 0 : i32
    %c0_i32_0 = arith.constant 0 : i32
    %c0_i32_1 = arith.constant 0 : i32
    return %c0_i32, %c0_i32_0 : i32, i32
  }
  func.func @transform_4(%arg0: i32, %arg1: i32) -> (i32, i32, i32, i32) {
    %c0_i32 = arith.constant 0 : i32
    %c0_i32_0 = arith.constant 0 : i32
    %c0_i32_1 = arith.constant 0 : i32
    return %arg0, %c0_i32, %arg1, %c0_i32_0 : i32, i32, i32, i32
  }
}

</mosaic_0001>

<llo_original>
// kernel: tpu_custom_call.1
$region0: #{tpu_custom_call.1}
  #allocation0 [shape = 'u32[]', space=smem, size = 0x4, offset = 0x4, fixed_abs, tag = 'smem constant byte address 0x4 - core index']
  #allocation1 [shape = 'u32[144,128]{1,0:T(1,128)}', space=vmem, size = 0x12000, scoped, tag = 'internal scratch']
  %s0 = inlined_call_operand.hbm [shape: f32[2,8,32], index: 0, kind: input, shape index: {}]
  %s1 = inlined_call_operand.vmem [shape: f32[1,32], index: 1, kind: input, shape index: {}]
  %s2 = inlined_call_operand.vmem [shape: f32[1,32], index: 2, kind: input, shape index: {}]
  %s3 = inlined_call_operand.hbm [shape: bf16[32,96], index: 3, kind: input, shape index: {}]
  %s4 = inlined_call_operand.vmem [shape: bf16[2,12,8,8], index: 4, kind: output, shape index: {}]
  %s5 = sld [smem:[#allocation0]]
  $region57: #{tpu_custom_call.1} parent=0
    _
  %s7 = ssub.s32 1, %s5
  %s8 = scalar_select 0, %s7, %s5
  $region1: #{tpu_custom_call.1} parent=0
    #allocation2 [shape = 'u8[8192]{0}', space=vmem, size = 0x2000, scoped, tag = 'input window, operand 0']
    #allocation3 [shape = 's32[2]{0}', space=sflag, size = 0x8, scoped, tag = 'scoped memory for tpu_custom_call.1']
    #allocation4 [shape = 'u8[8192]{0}', space=vmem, size = 0x2000, scoped, tag = 'input window, operand 3, single buffered']
    #allocation5 [shape = 's32[1]{0}', space=sflag, size = 0x4, scoped, tag = 'scoped memory for tpu_custom_call.1']
    %9 = vsyncpa [#allocation3], 0
    %s10 = scalar_lea.sflag [#allocation3], 1
    %11 = vsyncpa %s10, 0
    %12 = vsyncpa [#allocation5], 0
    loop: start=0, step=1, limit=4
    $region2: #{tpu_custom_call.1} parent=1 // loop_pre_header
      _
    $region3: #{tpu_custom_call.1} parent=1 // loop_header
      %s14 = sphi 0, %s18
      %p15 = scmp.ge.s32.totalorder %s14, 4
      %s21 = sphi 0, %s33
      %s22 = sphi 0, %s29
      %s23 = sphi 0, %s21
      %s24 = sphi 0, %s22
      %s25 = sphi 0, %s23
      %s26 = sphi 0, %s24
      %s38 = sphi 0, %s40
      %s41 = sphi 0, %s38
      %s42 = sphi 0, %s41
      %s58 = sphi 0, %s42
      %s62 = sphi 0, %s62
      %s64 = sphi 0, %s62
      %s65 = sphi 0, %s64
      %s79 = sphi 0, %s65
      %s83 = sphi 0, %s83
      %s85 = sphi 0, %s83
      %s86 = sphi 0, %s85
      %s100 = sphi 0, %s86
      %s104 = sphi 0, %s104
      %s106 = sphi 0, %s104
      %s107 = sphi 0, %s106
      %s121 = sphi 0, %s107
      %s129 = sphi 0, %s131
      %s132 = sphi 0, %s129
      %s133 = sphi 0, %s132
      %s149 = sphi 0, %s133
    $region4: #{tpu_custom_call.1} parent=1 // loop_header_branch
      %17 = sbr.rel (%p15) target = $region8
    $region5: #{tpu_custom_call.1} parent=1 // loop_body
      %s19 = ssub.s32 %s14, 1
      %s20 = ssub.s32 %s14, 2
      %s27 = sadd.s32 1, %s22
      %p28 = scmp.ge.s32.totalorder %s27, 1
      %s29 = scalar_select %p28, 0, %s27
      %s30 = sadd.s32 1, %s21
      %s31 = scalar_select %p28, %s30, %s21
      %p32 = scmp.ge.s32.totalorder %s31, 2
      %s33 = scalar_select %p32, 0, %s31
      %s34 = ssub.s32 %s21, %s33
      %s35 = ssub.s32 %s22, %s29
      %s36 = sor.u32 %s34, %s35
      %p37 = scmp.eq.s32.totalorder %s36, 0
      %s39 = sadd.s32 %s38, 1
      %s40 = scalar_select %p37, %s38, %s39
      %p43 = pneg %p37
      %p44 = scmp.eq.s32.totalorder %s14, 1
      %p45 = por %p43, %p44
      %p46 = scmp.ne.s32.totalorder %s38, %s41
      %p47 = scmp.eq.s32.totalorder %s14, 0
      %p48 = por %p46, %p47
      %p49 = scmp.ne.s32.totalorder %s38, %s41
      %p50 = scmp.eq.s32.totalorder %s19, 1
      %p51 = por %p49, %p50
      %p52 = scmp.ne.s32.totalorder %s41, %s42
      %p53 = scmp.eq.s32.totalorder %s19, 0
      %p54 = por %p52, %p53
      %p55 = scmp.ne.s32.totalorder %s41, %s42
      %p56 = scmp.eq.s32.totalorder %s20, 1
      %p57 = por %p55, %p56
      %p59 = scmp.ne.s32.totalorder %s42, %s58
      %p60 = scmp.eq.s32.totalorder %s20, 0
      %p61 = por %p59, %p60
      %s63 = sadd.s32 %s62, 1
      %p66 = scmp.eq.s32.totalorder %s14, 1
      %p67 = scmp.ne.s32.totalorder %s62, %s64
      %p68 = scmp.eq.s32.totalorder %s14, 0
      %p69 = por %p67, %p68
      %p70 = scmp.ne.s32.totalorder %s62, %s64
      %p71 = scmp.eq.s32.totalorder %s19, 1
      %p72 = por %p70, %p71
      %p73 = scmp.ne.s32.totalorder %s64, %s65
      %p74 = scmp.eq.s32.totalorder %s19, 0
      %p75 = por %p73, %p74
      %p76 = scmp.ne.s32.totalorder %s64, %s65
      %p77 = scmp.eq.s32.totalorder %s20, 1
      %p78 = por %p76, %p77
      %p80 = scmp.ne.s32.totalorder %s65, %s79
      %p81 = scmp.eq.s32.totalorder %s20, 0
      %p82 = por %p80, %p81
      %s84 = sadd.s32 %s83, 1
      %p87 = scmp.eq.s32.totalorder %s14, 1
      %p88 = scmp.ne.s32.totalorder %s83, %s85
      %p89 = scmp.eq.s32.totalorder %s14, 0
      %p90 = por %p88, %p89
      %p91 = scmp.ne.s32.totalorder %s83, %s85
      %p92 = scmp.eq.s32.totalorder %s19, 1
      %p93 = por %p91, %p92
      %p94 = scmp.ne.s32.totalorder %s85, %s86
      %p95 = scmp.eq.s32.totalorder %s19, 0
      %p96 = por %p94, %p95
      %p97 = scmp.ne.s32.totalorder %s85, %s86
      %p98 = scmp.eq.s32.totalorder %s20, 1
      %p99 = por %p97, %p98
      %p101 = scmp.ne.s32.totalorder %s86, %s100
      %p102 = scmp.eq.s32.totalorder %s20, 0
      %p103 = por %p101, %p102
      %s105 = sadd.s32 %s104, 1
      %p108 = scmp.eq.s32.totalorder %s14, 1
      %p109 = scmp.ne.s32.totalorder %s104, %s106
      %p110 = scmp.eq.s32.totalorder %s14, 0
      %p111 = por %p109, %p110
      %p112 = scmp.ne.s32.totalorder %s104, %s106
      %p113 = scmp.eq.s32.totalorder %s19, 1
      %p114 = por %p112, %p113
      %p115 = scmp.ne.s32.totalorder %s106, %s107
      %p116 = scmp.eq.s32.totalorder %s19, 0
      %p117 = por %p115, %p116
      %p118 = scmp.ne.s32.totalorder %s106, %s107
      %p119 = scmp.eq.s32.totalorder %s20, 1
      %p120 = por %p118, %p119
      %p122 = scmp.ne.s32.totalorder %s107, %s121
      %p123 = scmp.eq.s32.totalorder %s20, 0
      %p124 = por %p122, %p123
      %s125 = ssub.s32 %s21, %s33
      %s126 = ssub.s32 %s22, %s29
      %s127 = sor.u32 %s125, %s126
      %p128 = scmp.eq.s32.totalorder %s127, 0
      %s130 = sadd.s32 %s129, 1
      %s131 = scalar_select %p128, %s129, %s130
      %p134 = pneg %p128
      %p135 = scmp.eq.s32.totalorder %s14, 1
      %p136 = por %p134, %p135
      %p137 = scmp.ne.s32.totalorder %s129, %s132
      %p138 = scmp.eq.s32.totalorder %s14, 0
      %p139 = por %p137, %p138
      %p140 = scmp.ne.s32.totalorder %s129, %s132
      %p141 = scmp.eq.s32.totalorder %s19, 1
      %p142 = por %p140, %p141
      %p143 = scmp.ne.s32.totalorder %s132, %s133
      %p144 = scmp.eq.s32.totalorder %s19, 0
      %p145 = por %p143, %p144
      %p146 = scmp.ne.s32.totalorder %s132, %s133
      %p147 = scmp.eq.s32.totalorder %s20, 1
      %p148 = por %p146, %p147
      %p150 = scmp.ne.s32.totalorder %s133, %s149
      %p151 = scmp.eq.s32.totalorder %s20, 0
      %p152 = por %p150, %p151
      %p153 = scmp.le.s32.totalorder 1, %s14
      %p154 = scmp.lt.s32.totalorder %s14, 3
      %p155 = pnand %p153, %p154
      %p156 = pneg %p155
      // Predicated region
      $region9: #{tpu_custom_call.1} parent=5 // pred_check
        _
      $region10: #{tpu_custom_call.1} parent=5 // pred_check_branch
        %158 = sbr.rel (%p155) target = $region12
      $region11: #{tpu_custom_call.1} parent=5 // pred_region
        %s159 = ssub.s32 %s14, 1
        // Predicated region
        $region13: #{tpu_custom_call.1} parent=11 // pred_check
          %p160 = pneg %p75
        $region14: #{tpu_custom_call.1} parent=11 // pred_check_branch
          %162 = sbr.rel (%p160) target = $region16
        $region15: #{tpu_custom_call.1} parent=11 // pred_region
          _
        $region16: #{tpu_custom_call.1} parent=11 // pred_fallthru
          _
        // Predicated region
        $region17: #{tpu_custom_call.1} parent=11 // pred_check
          %p163 = pneg %p96
        $region18: #{tpu_custom_call.1} parent=11 // pred_check_branch
          %165 = sbr.rel (%p163) target = $region20
        $region19: #{tpu_custom_call.1} parent=11 // pred_region
          _
        $region20: #{tpu_custom_call.1} parent=11 // pred_fallthru
          _
        // Predicated region
        $region21: #{tpu_custom_call.1} parent=11 // pred_check
          %p166 = pneg %p117
        $region22: #{tpu_custom_call.1} parent=11 // pred_check_branch
          %168 = sbr.rel (%p166) target = $region24
        $region23: #{tpu_custom_call.1} parent=11 // pred_region
          %s170 = ssub.s32 256, 256
          %171 = vsyncadd [#allocation5], %s170
          %s172 = sshll.u32 [#allocation4], 4
          %s173 = int_to_ptr.vmem [resolvable:$true] %s172
          %178 = dma.hbm_to_vmem [thread:$0]  %s3, 256, %s173, [#allocation5], 64, 64, 4
        $region24: #{tpu_custom_call.1} parent=11 // pred_fallthru
          _
      $region12: #{tpu_custom_call.1} parent=5 // pred_fallthru
        _
      %p179 = scmp.lt.s32.totalorder %s14, 2
      // Predicated region
      $region25: #{tpu_custom_call.1} parent=5 // pred_check
        %p180 = pneg %p179
      $region26: #{tpu_custom_call.1} parent=5 // pred_check_branch
        %182 = sbr.rel (%p180) target = $region28
      $region27: #{tpu_custom_call.1} parent=5 // pred_region
        // Predicated region
        $region29: #{tpu_custom_call.1} parent=27 // pred_check
          %p183 = pneg %p48
        $region30: #{tpu_custom_call.1} parent=27 // pred_check_branch
          %185 = sbr.rel (%p183) target = $region32
        $region31: #{tpu_custom_call.1} parent=27 // pred_region
          %s186 = sand.u32 %s38, 1
          %s187 = scalar_lea.sflag [#allocation3], %s186
          %s188 = sand.u32 %s38, 1
          %s189 = smul.addr %s188, 8
          %s190 = scalar_lea.vmem [#allocation2], %s189
          %s192 = ssub.s32 128, 128
          %193 = vsyncadd %s187, %s192
          %s194 = sadd.s32 %s22, %s21
          %s195 = smul.addr %s194, 128
          %s196 = scalar_lea.hbm %s0, %s195
          %s198 = sshll.u32 %s190, 4
          %s199 = int_to_ptr.vmem [resolvable:$true] %s198
          %201 = dma.hbm_to_vmem [thread:$0]  %s196, 128, %s199, %s187
        $region32: #{tpu_custom_call.1} parent=27 // pred_fallthru
          _
      $region28: #{tpu_custom_call.1} parent=5 // pred_fallthru
        _
      %p202 = scmp.le.s32.totalorder 1, %s14
      %p203 = scmp.lt.s32.totalorder %s14, 3
      %p204 = pnand %p202, %p203
      %p205 = pneg %p204
      // Predicated region
      $region33: #{tpu_custom_call.1} parent=5 // pred_check
        _
      $region34: #{tpu_custom_call.1} parent=5 // pred_check_branch
        %207 = sbr.rel (%p204) target = $region36
      $region35: #{tpu_custom_call.1} parent=5 // pred_region
        %s208 = ssub.s32 %s14, 1
        %s209 = sand.u32 %s41, 1
        %s210 = scalar_lea.sflag [#allocation3], %s209
        %s211 = sand.u32 %s41, 1
        %s212 = smul.addr %s211, 8
        %s213 = scalar_lea.vmem [#allocation2], %s212
        // Predicated region
        $region37: #{tpu_custom_call.1} parent=35 // pred_check
          %p214 = pneg %p54
        $region38: #{tpu_custom_call.1} parent=35 // pred_check_branch
          %216 = sbr.rel (%p214) target = $region40
        $region39: #{tpu_custom_call.1} parent=35 // pred_region
          %217 = dma.done %s210, 128
        $region40: #{tpu_custom_call.1} parent=35 // pred_fallthru
          _
        // Predicated region
        $region41: #{tpu_custom_call.1} parent=35 // pred_check
          %p218 = pneg %p117
        $region42: #{tpu_custom_call.1} parent=35 // pred_check_branch
          %220 = sbr.rel (%p218) target = $region44
        $region43: #{tpu_custom_call.1} parent=35 // pred_region
          %221 = dma.done [#allocation5], 256
        $region44: #{tpu_custom_call.1} parent=35 // pred_fallthru
          _
        %s222 = sand.u32 %s41, 1
        %s223 = scalar_lea.sflag [#allocation3], %s222
        %s224 = sand.u32 %s41, 1
        %s225 = smul.addr %s224, 8
        %s226 = scalar_lea.vmem [#allocation2], %s225
        %p227 = pneg %p54
        %p228 = pneg %p51
        %p229 = pneg %p75
        %p230 = pneg %p72
        %p231 = pneg %p96
        %p232 = pneg %p93
        %p233 = pneg %p117
        %p234 = pneg %p114
        %p235 = pneg %p145
        %p236 = pneg %p142
        %p237 = scmp.lt.s32.totalorder %s23, 1
        %s238 = scalar_select %p237, %s23, 1
        %p239 = scmp.lt.s32.totalorder %s24, 0
        %s240 = scalar_select %p239, %s24, 0
        %s241 = smul.addr %s238, 12
        %s242 = sadd.s32 %s240, %s241
        %s243 = smul.addr %s242, 4
        %s244 = scalar_lea.vmem %s4, %s243
        %p245 = scmp.lt.s32.totalorder %s23, 1
        %s246 = scalar_select %p245, %s23, 1
        %p247 = scmp.lt.s32.totalorder %s24, 0
        %s248 = scalar_select %p247, %s24, 0
        %s249 = smul.addr %s246, 12
        %s250 = sadd.s32 %s248, %s249
        %s251 = smul.addr %s250, 4
        %s252 = scalar_lea.vmem %s4, %s251
        %v254 = vld [vmem:[%s213] sm:$0xff]
        %v255 = vld [vmem:[%s1] sm:$0x1]
        %v256 = vld [vmem:[%s2] sm:$0x1]
        %vm257 = vcmask 261120
        %v258 = vsel %vm257, %v254, 0.0
        %259 = vadd.xlane.f32.xlu0 %v258
        %v260 = vpop.xlane.xlu0 %259
        %v261 = vrcp.pop 32.0
        %v262 = vmul.f32 %v260, %v261
        %v263 = vsub.f32 %v254, %v262
        %v264 = vmul.f32 %v263, %v263
        %v265 = vsel %vm257, %v264, 0.0
        %266 = vadd.xlane.f32.xlu0 %v265
        %v267 = vpop.xlane.xlu0 %266
        %v268 = vmul.f32 %v267, %v261
        %v269 = vadd.f32 %v268, 1e-05
        %v270 = vrsqrt.pop %v269
        %v271 = vmul.f32 %v263, %v270
        %v273 = vlaneseq
        %v274 = vshrl.u32 %v273, 7
        %v275 = vsub.s32 0, %v274
        %v276 = vrot.slane %v255, %v275
        %v278 = vmul.f32 %v271, %v276
        %v280 = vlaneseq
        %v281 = vshrl.u32 %v280, 7
        %v282 = vsub.s32 0, %v281
        %v283 = vrot.slane %v256, %v282
        %v285 = vadd.f32 %v278, %v283
        %v286 = vpack.c.bf16 %v285, %v285
        %v287 = vld [vmem:[#allocation4] sm:$0xf]
        %v288 = vld [vmem:[#allocation4 + $0x4] sm:$0xf]
        %v289 = vld [vmem:[#allocation4 + $0x8] sm:$0xf]
        %v290 = vld [vmem:[#allocation4 + $0xc] sm:$0xf]
        %v295 = vunpack.c.l.b16 %v287
        %v296 = vunpack.c.l.b16 %v288
        %v297 = vunpack.c.l.b16 %v289
        %v298 = vunpack.c.l.b16 %v290
        %v299 = vpack.c.b16 %v296, %v295
        %v300 = vpack.c.b16 %v298, %v297
        %v304 = vsel %vm257, %v286, 0
        %306 = vmatprep.subr.bf16.mxu0 0
        %307 = vmatpush1.bf16.msra.mxu0 0
        %308 = vmatprep.subr.bf16.mxu0 0
        %309 = vmatpush1.bf16.msra.mxu0 0
        %310 = vmatprep.subr.bf16.mxu0 0
        %311 = vmatpush1.bf16.msra.mxu0 0
        %312 = vmatprep.subr.bf16.mxu0 0
        %313 = vmatpush1.bf16.msra.mxu0 0
        %314 = vmatprep.subr.bf16.mxu0 0
        %315 = vmatpush1.bf16.msra.mxu0 0
        %316 = vmatprep.subr.bf16.mxu0 0
        %317 = vmatpush1.bf16.msra.mxu0 0
        %318 = vmatprep.subr.bf16.mxu0 0
        %319 = vmatpush1.bf16.msra.mxu0 %v300
        %320 = vmatprep.subr.bf16.mxu0 0
        %321 = vmatpush1.bf16.msra.mxu0 %v299
        %322 = vmatprep.subr.bf16.mxu0 0
        %323 = vmatpush2.bf16.msra.mxu0 0
        %324 = vmatprep.subr.bf16.mxu0 0
        %325 = vmatpush2.bf16.msra.mxu0 0
        %326 = vmatprep.subr.bf16.mxu0 0
        %327 = vmatpush2.bf16.msra.mxu0 0
        %328 = vmatprep.subr.bf16.mxu0 0
        %329 = vmatpush2.bf16.msra.mxu0 0
        %330 = vmatprep.subr.bf16.mxu0 0
        %331 = vmatpush2.bf16.msra.mxu0 0
        %332 = vmatprep.subr.bf16.mxu0 0
        %333 = vmatpush2.bf16.msra.mxu0 0
        %334 = vmatprep.subr.bf16.mxu0 0
        %335 = vmatpush2.bf16.msra.mxu0 0
        %336 = vmatprep.subr.bf16.mxu0 0
        %337 = vmatpush2.bf16.msra.mxu0 0
        %338 = vmatprep.mubr.bf16.mxu0 0
        %339 = vmatmul.mubr.bf16.gmra.mxu0 %v304
        %v340 = vpop.f32.mrf.mxu0
        %v341 = vadd.f32 0.0, %v340
        %v342 = vpop.f32.mrf.mxu0
        %v343 = vpop.f32.mrf.mxu0
        %v344 = vpop.f32.mrf.mxu0
        %345 = vdwg.mxu0
        %347 = vrot.lane.b32.xlu0 %v341, 120
        %v348 = vpop.permute.xlu0 %347
        %350 = vrot.lane.b32.xlu0 %v341, 112
        %v351 = vpop.permute.xlu0 %350
        %353 = vrot.lane.b32.xlu0 %v341, 104
        %v354 = vpop.permute.xlu0 %353
        %356 = vrot.lane.b32.xlu0 %v341, 96
        %v357 = vpop.permute.xlu0 %356
        %359 = vrot.lane.b32.xlu0 %v341, 88
        %v360 = vpop.permute.xlu0 %359
        %362 = vrot.lane.b32.xlu0 %v341, 80
        %v363 = vpop.permute.xlu0 %362
        %365 = vrot.lane.b32.xlu0 %v341, 72
        %v366 = vpop.permute.xlu0 %365
        %368 = vrot.lane.b32.xlu0 %v341, 64
        %v369 = vpop.permute.xlu0 %368
        %371 = vrot.lane.b32.xlu0 %v341, 56
        %v372 = vpop.permute.xlu0 %371
        %374 = vrot.lane.b32.xlu0 %v341, 48
        %v375 = vpop.permute.xlu0 %374
        %377 = vrot.lane.b32.xlu0 %v341, 40
        %v378 = vpop.permute.xlu0 %377
        %v380 = vcombine.low %v341, %v351
        %v381 = vcombine.high %v341, %v351
        %v383 = vunpack.c.l.s4 1983009808
        %v384 = vunpack.c.0.s8 %v383
        %v385 = vlaneseq
        %v386 = vshrl.u32 %v385, 7
        %v387 = vsub.s32 %v384, %v386
        %v388 = vrot.slane %v380, %v387
        %v390 = vunpack.c.l.s4 1983009808
        %v391 = vunpack.c.0.s8 %v390
        %v392 = vlaneseq
        %v393 = vshrl.u32 %v392, 7
        %v394 = vsub.s32 %v391, %v393
        %v395 = vrot.slane %v381, %v394
        %v396 = vcombine.low %v348, %v354
        %v397 = vcombine.high %v348, %v354
        %v399 = vunpack.c.l.s4 1983009808
        %v400 = vunpack.c.0.s8 %v399
        %v401 = vlaneseq
        %v402 = vshrl.u32 %v401, 7
        %v403 = vsub.s32 %v400, %v402
        %v404 = vrot.slane %v396, %v403
        %v406 = vunpack.c.l.s4 1983009808
        %v407 = vunpack.c.0.s8 %v406
        %v408 = vlaneseq
        %v409 = vshrl.u32 %v408, 7
        %v410 = vsub.s32 %v407, %v409
        %v411 = vrot.slane %v397, %v410
        %v412 = vcombine.low %v357, %v363
        %v413 = vcombine.high %v357, %v363
        %v415 = vunpack.c.l.s4 1983009808
        %v416 = vunpack.c.0.s8 %v415
        %v417 = vlaneseq
        %v418 = vshrl.u32 %v417, 7
        %v419 = vsub.s32 %v416, %v418
        %v420 = vrot.slane %v412, %v419
        %v422 = vunpack.c.l.s4 1983009808
        %v423 = vunpack.c.0.s8 %v422
        %v424 = vlaneseq
        %v425 = vshrl.u32 %v424, 7
        %v426 = vsub.s32 %v423, %v425
        %v427 = vrot.slane %v413, %v426
        %v428 = vcombine.low %v360, %v366
        %v429 = vcombine.high %v360, %v366
        %v431 = vunpack.c.l.s4 1983009808
        %v432 = vunpack.c.0.s8 %v431
        %v433 = vlaneseq
        %v434 = vshrl.u32 %v433, 7
        %v435 = vsub.s32 %v432, %v434
        %v436 = vrot.slane %v428, %v435
        %v438 = vunpack.c.l.s4 1983009808
        %v439 = vunpack.c.0.s8 %v438
        %v440 = vlaneseq
        %v441 = vshrl.u32 %v440, 7
        %v442 = vsub.s32 %v439, %v441
        %v443 = vrot.slane %v429, %v442
        %v444 = vcombine.low %v388, %v404
        %v445 = vcombine.high %v388, %v404
        %v447 = vunpack.c.l.s4 1934713408
        %v448 = vunpack.c.0.s8 %v447
        %v449 = vlaneseq
        %v450 = vshrl.u32 %v449, 7
        %v451 = vsub.s32 %v448, %v450
        %v452 = vrot.slane %v444, %v451
        %v454 = vunpack.c.l.s4 1934713408
        %v455 = vunpack.c.0.s8 %v454
        %v456 = vlaneseq
        %v457 = vshrl.u32 %v456, 7
        %v458 = vsub.s32 %v455, %v457
        %v459 = vrot.slane %v445, %v458
        %v460 = vcombine.low %v395, %v411
        %v461 = vcombine.high %v395, %v411
        %v463 = vunpack.c.l.s4 1934713408
        %v464 = vunpack.c.0.s8 %v463
        %v465 = vlaneseq
        %v466 = vshrl.u32 %v465, 7
        %v467 = vsub.s32 %v464, %v466
        %v468 = vrot.slane %v460, %v467
        %v470 = vunpack.c.l.s4 1934713408
        %v471 = vunpack.c.0.s8 %v470
        %v472 = vlaneseq
        %v473 = vshrl.u32 %v472, 7
        %v474 = vsub.s32 %v471, %v473
        %v475 = vrot.slane %v461, %v474
        %v476 = vcombine.low %v420, %v436
        %v477 = vcombine.high %v420, %v436
        %v479 = vunpack.c.l.s4 1934713408
        %v480 = vunpack.c.0.s8 %v479
        %v481 = vlaneseq
        %v482 = vshrl.u32 %v481, 7
        %v483 = vsub.s32 %v480, %v482
        %v484 = vrot.slane %v476, %v483
        %v486 = vunpack.c.l.s4 1934713408
        %v487 = vunpack.c.0.s8 %v486
        %v488 = vlaneseq
        %v489 = vshrl.u32 %v488, 7
        %v490 = vsub.s32 %v487, %v489
        %v491 = vrot.slane %v477, %v490
        %v492 = vcombine.low %v427, %v443
        %v493 = vcombine.high %v427, %v443
        %v495 = vunpack.c.l.s4 1934713408
        %v496 = vunpack.c.0.s8 %v495
        %v497 = vlaneseq
        %v498 = vshrl.u32 %v497, 7
        %v499 = vsub.s32 %v496, %v498
        %v500 = vrot.slane %v492, %v499
        %v502 = vunpack.c.l.s4 1934713408
        %v503 = vunpack.c.0.s8 %v502
        %v504 = vlaneseq
        %v505 = vshrl.u32 %v504, 7
        %v506 = vsub.s32 %v503, %v505
        %v507 = vrot.slane %v493, %v506
        %v508 = vcombine.low %v452, %v484
        %v509 = vcombine.high %v452, %v484
        %v510 = vcombine.low %v459, %v491
        %v511 = vcombine.high %v459, %v491
        %v512 = vcombine.low %v468, %v500
        %v513 = vcombine.high %v468, %v500
        %v514 = vcombine.low %v475, %v507
        %v515 = vcombine.high %v475, %v507
        %v516 = vcombine.low %v369, %v375
        %v517 = vcombine.high %v369, %v375
        %v519 = vunpack.c.l.s4 1983009808
        %v520 = vunpack.c.0.s8 %v519
        %v521 = vlaneseq
        %v522 = vshrl.u32 %v521, 7
        %v523 = vsub.s32 %v520, %v522
        %v524 = vrot.slane %v516, %v523
        %v526 = vunpack.c.l.s4 1983009808
        %v527 = vunpack.c.0.s8 %v526
        %v528 = vlaneseq
        %v529 = vshrl.u32 %v528, 7
        %v530 = vsub.s32 %v527, %v529
        %v531 = vrot.slane %v517, %v530
        %v532 = vcombine.low %v372, %v378
        %v533 = vcombine.high %v372, %v378
        %v535 = vunpack.c.l.s4 1983009808
        %v536 = vunpack.c.0.s8 %v535
        %v537 = vlaneseq
        %v538 = vshrl.u32 %v537, 7
        %v539 = vsub.s32 %v536, %v538
        %v540 = vrot.slane %v532, %v539
        %v542 = vunpack.c.l.s4 1983009808
        %v543 = vunpack.c.0.s8 %v542
        %v544 = vlaneseq
        %v545 = vshrl.u32 %v544, 7
        %v546 = vsub.s32 %v543, %v545
        %v547 = vrot.slane %v533, %v546
        %v548 = vcombine.low %v524, %v540
        %v549 = vcombine.high %v524, %v540
        %v551 = vunpack.c.l.s4 1934713408
        %v552 = vunpack.c.0.s8 %v551
        %v553 = vlaneseq
        %v554 = vshrl.u32 %v553, 7
        %v555 = vsub.s32 %v552, %v554
        %v556 = vrot.slane %v548, %v555
        %v558 = vunpack.c.l.s4 1934713408
        %v559 = vunpack.c.0.s8 %v558
        %v560 = vlaneseq
        %v561 = vshrl.u32 %v560, 7
        %v562 = vsub.s32 %v559, %v561
        %v563 = vrot.slane %v549, %v562
        %v564 = vcombine.low %v531, %v547
        %v565 = vcombine.high %v531, %v547
        %v567 = vunpack.c.l.s4 1934713408
        %v568 = vunpack.c.0.s8 %v567
        %v569 = vlaneseq
        %v570 = vshrl.u32 %v569, 7
        %v571 = vsub.s32 %v568, %v570
        %v572 = vrot.slane %v564, %v571
        %v574 = vunpack.c.l.s4 1934713408
        %v575 = vunpack.c.0.s8 %v574
        %v576 = vlaneseq
        %v577 = vshrl.u32 %v576, 7
        %v578 = vsub.s32 %v575, %v577
        %v579 = vrot.slane %v565, %v578
        %v580 = vcombine.high %v556, 0.0
        %v581 = vcombine.high %v563, 0.0
        %v582 = vcombine.high %v572, 0.0
        %v583 = vcombine.high %v579, 0.0
        %v584 = vcombine.low %v508, %v510
        %v585 = vcombine.high %v508, %v510
        %v587 = vunpack.c.l.s4 1983009808
        %v588 = vunpack.c.0.s8 %v587
        %v589 = vlaneseq
        %v590 = vshrl.u32 %v589, 7
        %v591 = vsub.s32 %v588, %v590
        %v592 = vrot.slane %v584, %v591
        %v594 = vunpack.c.l.s4 1983009808
        %v595 = vunpack.c.0.s8 %v594
        %v596 = vlaneseq
        %v597 = vshrl.u32 %v596, 7
        %v598 = vsub.s32 %v595, %v597
        %v599 = vrot.slane %v585, %v598
        %v600 = vcombine.low %v509, %v511
        %v601 = vcombine.high %v509, %v511
        %v603 = vunpack.c.l.s4 1983009808
        %v604 = vunpack.c.0.s8 %v603
        %v605 = vlaneseq
        %v606 = vshrl.u32 %v605, 7
        %v607 = vsub.s32 %v604, %v606
        %v608 = vrot.slane %v600, %v607
        %v610 = vunpack.c.l.s4 1983009808
        %v611 = vunpack.c.0.s8 %v610
        %v612 = vlaneseq
        %v613 = vshrl.u32 %v612, 7
        %v614 = vsub.s32 %v611, %v613
        %v615 = vrot.slane %v601, %v614
        %v616 = vcombine.low %v512, %v514
        %v617 = vcombine.high %v512, %v514
        %v619 = vunpack.c.l.s4 1983009808
        %v620 = vunpack.c.0.s8 %v619
        %v621 = vlaneseq
        %v622 = vshrl.u32 %v621, 7
        %v623 = vsub.s32 %v620, %v622
        %v624 = vrot.slane %v616, %v623
        %v626 = vunpack.c.l.s4 1983009808
        %v627 = vunpack.c.0.s8 %v626
        %v628 = vlaneseq
        %v629 = vshrl.u32 %v628, 7
        %v630 = vsub.s32 %v627, %v629
        %v631 = vrot.slane %v617, %v630
        %v632 = vcombine.low %v513, %v515
        %v633 = vcombine.high %v513, %v515
        %v635 = vunpack.c.l.s4 1983009808
        %v636 = vunpack.c.0.s8 %v635
        %v637 = vlaneseq
        %v638 = vshrl.u32 %v637, 7
        %v639 = vsub.s32 %v636, %v638
        %v640 = vrot.slane %v632, %v639
        %v642 = vunpack.c.l.s4 1983009808
        %v643 = vunpack.c.0.s8 %v642
        %v644 = vlaneseq
        %v645 = vshrl.u32 %v644, 7
        %v646 = vsub.s32 %v643, %v645
        %v647 = vrot.slane %v633, %v646
        %v648 = vcombine.low %v592, %v608
        %v649 = vcombine.high %v592, %v608
        %v651 = vunpack.c.l.s4 1934713408
        %v652 = vunpack.c.0.s8 %v651
        %v653 = vlaneseq
        %v654 = vshrl.u32 %v653, 7
        %v655 = vsub.s32 %v652, %v654
        %v656 = vrot.slane %v648, %v655
        %v658 = vunpack.c.l.s4 1934713408
        %v659 = vunpack.c.0.s8 %v658
        %v660 = vlaneseq
        %v661 = vshrl.u32 %v660, 7
        %v662 = vsub.s32 %v659, %v661
        %v663 = vrot.slane %v649, %v662
        %v664 = vcombine.low %v599, %v615
        %v665 = vcombine.high %v599, %v615
        %v667 = vunpack.c.l.s4 1934713408
        %v668 = vunpack.c.0.s8 %v667
        %v669 = vlaneseq
        %v670 = vshrl.u32 %v669, 7
        %v671 = vsub.s32 %v668, %v670
        %v672 = vrot.slane %v664, %v671
        %v674 = vunpack.c.l.s4 1934713408
        %v675 = vunpack.c.0.s8 %v674
        %v676 = vlaneseq
        %v677 = vshrl.u32 %v676, 7
        %v678 = vsub.s32 %v675, %v677
        %v679 = vrot.slane %v665, %v678
        %v680 = vcombine.low %v624, %v640
        %v681 = vcombine.high %v624, %v640
        %v683 = vunpack.c.l.s4 1934713408
        %v684 = vunpack.c.0.s8 %v683
        %v685 = vlaneseq
        %v686 = vshrl.u32 %v685, 7
        %v687 = vsub.s32 %v684, %v686
        %v688 = vrot.slane %v680, %v687
        %v690 = vunpack.c.l.s4 1934713408
        %v691 = vunpack.c.0.s8 %v690
        %v692 = vlaneseq
        %v693 = vshrl.u32 %v692, 7
        %v694 = vsub.s32 %v691, %v693
        %v695 = vrot.slane %v681, %v694
        %v696 = vcombine.low %v631, %v647
        %v697 = vcombine.high %v631, %v647
        %v699 = vunpack.c.l.s4 1934713408
        %v700 = vunpack.c.0.s8 %v699
        %v701 = vlaneseq
        %v702 = vshrl.u32 %v701, 7
        %v703 = vsub.s32 %v700, %v702
        %v704 = vrot.slane %v696, %v703
        %v706 = vunpack.c.l.s4 1934713408
        %v707 = vunpack.c.0.s8 %v706
        %v708 = vlaneseq
        %v709 = vshrl.u32 %v708, 7
        %v710 = vsub.s32 %v707, %v709
        %v711 = vrot.slane %v697, %v710
        %v712 = vcombine.low %v656, %v688
        %v713 = vcombine.high %v656, %v688
        %v714 = vcombine.low %v663, %v695
        %v715 = vcombine.high %v663, %v695
        %v716 = vcombine.low %v672, %v704
        %v717 = vcombine.high %v672, %v704
        %v718 = vcombine.low %v679, %v711
        %v719 = vcombine.high %v679, %v711
        %v720 = vcombine.low %v556, %v563
        %v722 = vunpack.c.l.s4 1983009808
        %v723 = vunpack.c.0.s8 %v722
        %v724 = vlaneseq
        %v725 = vshrl.u32 %v724, 7
        %v726 = vsub.s32 %v723, %v725
        %v727 = vrot.slane %v720, %v726
        %v728 = vcombine.low %v580, %v581
        %v730 = vunpack.c.l.s4 1983009808
        %v731 = vunpack.c.0.s8 %v730
        %v732 = vlaneseq
        %v733 = vshrl.u32 %v732, 7
        %v734 = vsub.s32 %v731, %v733
        %v735 = vrot.slane %v728, %v734
        %v736 = vcombine.low %v572, %v579
        %v738 = vunpack.c.l.s4 1983009808
        %v739 = vunpack.c.0.s8 %v738
        %v740 = vlaneseq
        %v741 = vshrl.u32 %v740, 7
        %v742 = vsub.s32 %v739, %v741
        %v743 = vrot.slane %v736, %v742
        %v744 = vcombine.low %v582, %v583
        %v746 = vunpack.c.l.s4 1983009808
        %v747 = vunpack.c.0.s8 %v746
        %v748 = vlaneseq
        %v749 = vshrl.u32 %v748, 7
        %v750 = vsub.s32 %v747, %v749
        %v751 = vrot.slane %v744, %v750
        %v752 = vcombine.low %v727, %v735
        %v753 = vcombine.high %v727, %v735
        %v755 = vunpack.c.l.s4 1934713408
        %v756 = vunpack.c.0.s8 %v755
        %v757 = vlaneseq
        %v758 = vshrl.u32 %v757, 7
        %v759 = vsub.s32 %v756, %v758
        %v760 = vrot.slane %v752, %v759
        %v762 = vunpack.c.l.s4 1934713408
        %v763 = vunpack.c.0.s8 %v762
        %v764 = vlaneseq
        %v765 = vshrl.u32 %v764, 7
        %v766 = vsub.s32 %v763, %v765
        %v767 = vrot.slane %v753, %v766
        %v768 = vcombine.low %v743, %v751
        %v769 = vcombine.high %v743, %v751
        %v771 = vunpack.c.l.s4 1934713408
        %v772 = vunpack.c.0.s8 %v771
        %v773 = vlaneseq
        %v774 = vshrl.u32 %v773, 7
        %v775 = vsub.s32 %v772, %v774
        %v776 = vrot.slane %v768, %v775
        %v778 = vunpack.c.l.s4 1934713408
        %v779 = vunpack.c.0.s8 %v778
        %v780 = vlaneseq
        %v781 = vshrl.u32 %v780, 7
        %v782 = vsub.s32 %v779, %v781
        %v783 = vrot.slane %v769, %v782
        %v784 = vcombine.low %v760, %v776
        %v785 = vcombine.high %v760, %v776
        %v786 = vcombine.low %v767, %v783
        %v787 = vcombine.high %v767, %v783
        %v788 = vpack.c.bf16 %v712, %v712
        %v789 = vpack.c.bf16 %v713, %v713
        %v790 = vpack.c.bf16 %v714, %v714
        %v791 = vpack.c.bf16 %v715, %v715
        %v792 = vpack.c.bf16 %v716, %v716
        %v793 = vpack.c.bf16 %v717, %v717
        %v794 = vpack.c.bf16 %v718, %v718
        %v795 = vpack.c.bf16 %v719, %v719
        %v796 = vpack.c.bf16 %v784, %v784
        %v797 = vpack.c.bf16 %v785, %v785
        %v798 = vpack.c.bf16 %v786, %v786
        %v799 = vpack.c.bf16 %v787, %v787
        %vm800 = vcmask 60416
        %801 = vst.msk [vmem:[%s252] sm:$0xf] %vm800, %v788
        %802 = vst.msk [vmem:[%s252 + $0x4] sm:$0xf] %vm800, %v789
        %803 = vst.msk [vmem:[%s252 + $0x8] sm:$0xf] %vm800, %v790
        %804 = vst.msk [vmem:[%s252 + $0xc] sm:$0xf] %vm800, %v791
        %805 = vst.msk [vmem:[%s252 + $0x10] sm:$0xf] %vm800, %v792
        %806 = vst.msk [vmem:[%s252 + $0x14] sm:$0xf] %vm800, %v793
        %807 = vst.msk [vmem:[%s252 + $0x18] sm:$0xf] %vm800, %v794
        %808 = vst.msk [vmem:[%s252 + $0x1c] sm:$0xf] %vm800, %v795
        %809 = vst.msk [vmem:[%s252 + $0x20] sm:$0xf] %vm800, %v796
        %810 = vst.msk [vmem:[%s252 + $0x24] sm:$0xf] %vm800, %v797
        %811 = vst.msk [vmem:[%s252 + $0x28] sm:$0xf] %vm800, %v798
        %812 = vst.msk [vmem:[%s252 + $0x2c] sm:$0xf] %vm800, %v799
        %p813 = scmp.lt.s32.totalorder %s23, 1
        %s814 = scalar_select %p813, %s23, 1
        %p815 = scmp.lt.s32.totalorder %s24, 0
        %s816 = scalar_select %p815, %s24, 0
        %s817 = smul.addr %s814, 12
        %s818 = sadd.s32 %s816, %s817
        %s819 = smul.addr %s818, 4
        %s820 = scalar_lea.vmem %s4, %s819
        // Predicated region
        $region45: #{tpu_custom_call.1} parent=35 // pred_check
          %p821 = pneg %p142
        $region46: #{tpu_custom_call.1} parent=35 // pred_check_branch
          %823 = sbr.rel (%p821) target = $region48
        $region47: #{tpu_custom_call.1} parent=35 // pred_region
          _
        $region48: #{tpu_custom_call.1} parent=35 // pred_fallthru
          _
      $region36: #{tpu_custom_call.1} parent=5 // pred_fallthru
        _
      %p824 = scmp.le.s32.totalorder 2, %s14
      // Predicated region
      $region49: #{tpu_custom_call.1} parent=5 // pred_check
        %p825 = pneg %p824
      $region50: #{tpu_custom_call.1} parent=5 // pred_check_branch
        %827 = sbr.rel (%p825) target = $region52
      $region51: #{tpu_custom_call.1} parent=5 // pred_region
        %s828 = ssub.s32 %s14, 2
        // Predicated region
        $region53: #{tpu_custom_call.1} parent=51 // pred_check
          %p829 = pneg %p148
        $region54: #{tpu_custom_call.1} parent=51 // pred_check_branch
          %831 = sbr.rel (%p829) target = $region56
        $region55: #{tpu_custom_call.1} parent=51 // pred_region
          %p832 = scmp.lt.s32.totalorder %s25, 1
          %s833 = scalar_select %p832, %s25, 1
          %p834 = scmp.lt.s32.totalorder %s26, 0
          %s835 = scalar_select %p834, %s26, 0
          %s836 = smul.addr %s833, 12
          %s837 = sadd.s32 %s835, %s836
          %s838 = smul.addr %s837, 4
          %s839 = scalar_lea.vmem %s4, %s838
        $region56: #{tpu_custom_call.1} parent=51 // pred_fallthru
          _
      $region52: #{tpu_custom_call.1} parent=5 // pred_fallthru
        _
    $region6: #{tpu_custom_call.1} parent=1 // loop_footer
      %s18 = sadd.s32 1, %s14
    $region7: #{tpu_custom_call.1} parent=1 // loop_footer_branch
      %13 = sbr.rel target = $region3
    $region8: #{tpu_custom_call.1} parent=1 // loop_exit
      _
    %840 = vsyncpa [#allocation3], 1
    %s841 = scalar_lea.sflag [#allocation3], 1
    %842 = vsyncpa %s841, 1
    %843 = vsyncpa [#allocation5], 1

</llo_original>
